<compile_context>
chip_gen: v7x
topology: tpu7x:2x2x1
jax: 0.10.0
libtpu: 0.0.40
codegen_flags: <defaults>
</compile_context>

<pallas_src>
import functools

import jax
import jax.numpy as jnp
from jax.experimental import pallas as pl
from jax.experimental.pallas import tpu as pltpu

_LANE = 128
_SUBLANE = 16  # bf16 sublane pack; keep the batch tile a multiple of this


def _round_up(v, m):
    return (v + m - 1) // m * m


def _cdiv(a, b):
    return -(-a // b)


def _tanh_mlp_kernel(x_ref, w1_ref, w23_ref, b_ref, o_ref, *, d1, d2, ncls_pad):
    """One batch tile: tanh(x@W1+b1) -> tanh(.@W2+b2) -> .@W3+b3 (128-lane padded)."""
    x = x_ref[...]                    # (TB, flattened) bf16 MXU operand

    # Packed bias rows, kept f32 so the elementwise epilogue stays f32.
    b1 = b_ref[0:1, :d1]              # (1, d1)
    b2 = b_ref[1:2, :d2]              # (1, d2)
    b3 = b_ref[2:3, :ncls_pad]        # (1, ncls_pad), zeros past n_classes

    # fc1 + tanh
    h = jnp.dot(x, w1_ref[...], preferred_element_type=jnp.float32)          # (TB, d1)
    h = jnp.tanh(h + b1)

    # fc2 + tanh  (W2 is rows [0, d1) of the packed weight buffer)
    h = jnp.dot(h.astype(jnp.bfloat16), w23_ref[0:d1, 0:d2],
                preferred_element_type=jnp.float32)                           # (TB, d2)
    h = jnp.tanh(h + b2)

    # fc3, no activation (W3 is rows [d1, d1+d2), lane-padded to ncls_pad)
    h = jnp.dot(h.astype(jnp.bfloat16), w23_ref[d1:d1 + d2, 0:ncls_pad],
                preferred_element_type=jnp.float32)                           # (TB, ncls_pad)
    o_ref[...] = (h + b3).astype(o_ref.dtype)


def tanh_model3_forward(x, params, *, batch_tile=1024, vmem_budget_bytes=12 << 20):
    """x: (B, C, H, W) / (B, H, W) / (B, H*W).  Returns (B, n_classes) float32."""
    w1, b1, w2, b2, w3, b3 = params
    flattened, d1 = w1.shape                 # (img_h*img_w, 512)
    d2 = w2.shape[1]                         # 128
    n_classes = w3.shape[1]
    ncls_pad = _round_up(n_classes, _LANE)   # lane-dense output width
    lane_w = max(_round_up(d2, _LANE), ncls_pad)

    # Flatten + cast to bf16 side by side so XLA fuses them into one pass over x.
    xf = x.reshape(-1, flattened).astype(jnp.bfloat16)
    B = xf.shape[0]

    # --- resident weight / bias packing (bf16 MXU operands, fused buffers) ---
    w1_b = w1.astype(jnp.bfloat16)                                     # (flattened, d1)
    w2_p = jnp.zeros((d1, lane_w), jnp.float32).at[:, :d2].set(w2)
    w3_p = jnp.zeros((d2, lane_w), jnp.float32).at[:, :n_classes].set(w3)
    w23 = jnp.concatenate([w2_p, w3_p], axis=0).astype(jnp.bfloat16)   # (d1+d2, lane_w)

    bias_w = max(d1, d2, ncls_pad)
    biases = jnp.zeros((8, bias_w), jnp.float32)
    biases = biases.at[0, :d1].set(b1)
    biases = biases.at[1, :d2].set(b2)
    biases = biases.at[2, :n_classes].set(b3)

    resident_bytes = w1_b.size * 2 + w23.size * 2 + biases.size * 4

    # --- batch tiling ---------------------------------------------------------
    B_r = _round_up(B, _SUBLANE)
    num_tiles = max(1, _cdiv(B_r, batch_tile))
    if B_r >= 2 * _SUBLANE:
        num_tiles = max(num_tiles, 2)        # >=2 grid steps -> both v7x TCs busy
    TB = _round_up(_cdiv(B_r, num_tiles), _SUBLANE)

    def _tile_vmem(tb):
        # double-buffered x (bf16) + out (f32) tiles + single-buffered weights
        return 2 * tb * flattened * 2 + 2 * tb * ncls_pad * 4 + resident_bytes

    # Shrink TB if it would overshoot the conservative VMEM budget (v5e: 16 MiB
    # default scoped VMEM).  For very large tiles, prefer setting
    # pltpu.CompilerParams(vmem_limit_bytes=...) and re-budgeting per chip
    # (v7x: 64 MiB physical / 32 MiB default scoped) instead of shrinking.
    while TB > _SUBLANE and _tile_vmem(TB) > vmem_budget_bytes:
        TB = max(_SUBLANE, _round_up(TB // 2, _SUBLANE))

    num_tiles = _cdiv(B_r, TB)
    B_pad = num_tiles * TB
    if B_pad != B:
        xf = jnp.pad(xf, ((0, B_pad - B), (0, 0)))

    kernel = functools.partial(_tanh_mlp_kernel, d1=d1, d2=d2, ncls_pad=ncls_pad)

    cost = pl.CostEstimate(
        flops=2 * B_pad * (flattened * d1 + d1 * d2 + d2 * ncls_pad),
        transcendentals=B_pad * (d1 + d2),
        bytes_accessed=(xf.size * 2 + w1_b.size * 2 + w23.size * 2
                        + biases.size * 4 + B_pad * ncls_pad * 4),
    )

    resident = pl.Buffered(1)   # constant blocks: no second pipeline buffer
    out_pad = pl.pallas_call(
        kernel,
        out_shape=jax.ShapeDtypeStruct((B_pad, ncls_pad), jnp.float32),
        grid=(num_tiles,),
        in_specs=[
            pl.BlockSpec((TB, flattened), lambda i: (i, 0)),                       # x batch tile
            pl.BlockSpec(w1_b.shape, lambda i: (0, 0), pipeline_mode=resident),    # W1 (resident)
            pl.BlockSpec(w23.shape, lambda i: (0, 0), pipeline_mode=resident),     # packed W2|W3
            pl.BlockSpec(biases.shape, lambda i: (0, 0), pipeline_mode=resident),  # packed biases
        ],
        out_specs=pl.BlockSpec((TB, ncls_pad), lambda i: (i, 0)),
        compiler_params=pltpu.CompilerParams(
            dimension_semantics=("parallel",)),
        cost_estimate=cost,
    )(xf, w1_b, w23, biases)

    return out_pad[:B, :n_classes]


def init_params(key, img_h, img_w, n_classes):
    """Deterministic init mimicking nn.Linear's default U(-1/sqrt(fan_in), +)."""
    flattened = img_h * img_w
    dims = [(flattened, 512), (512, 128), (128, n_classes)]
    params = []
    for i, (fan_in, fan_out) in enumerate(dims):
        kw, kb = jax.random.split(jax.random.fold_in(key, i))
        bound = 1.0 / (fan_in ** 0.5)
        # stored as (in, out) so the kernel computes x @ W
        w = jax.random.uniform(kw, (fan_in, fan_out), jnp.float32, -bound, bound)
        b = jax.random.uniform(kb, (fan_out,), jnp.float32, -bound, bound)
        params += [w, b]
    return tuple(params)


if __name__ == "__main__":
    img_h, img_w, n_classes = 16, 16, 10
    batch = 32   # small demo batch; >= 2 batch tiles so the parallel grid path runs

    key = jax.random.PRNGKey(0)
    k_x, k_p = jax.random.split(key)
    x = jax.random.normal(k_x, (batch, 1, img_h, img_w), dtype=jnp.float32)
    params = init_params(k_p, img_h, img_w, n_classes)

    out = jax.block_until_ready(tanh_model3_forward(x, params))
    assert out.shape == (batch, n_classes)

    w1, b1, w2, b2, w3, b3 = params
    xf = x.reshape(-1, img_h * img_w)

    # Reference 1: same mixed-precision path as the kernel (bf16 MXU, f32 accum).
    xb = xf.astype(jnp.bfloat16)
    h = jnp.tanh(jnp.dot(xb, w1.astype(jnp.bfloat16),
                         preferred_element_type=jnp.float32) + b1)
    h = jnp.tanh(jnp.dot(h.astype(jnp.bfloat16), w2.astype(jnp.bfloat16),
                         preferred_element_type=jnp.float32) + b2)
    ref_bf16 = jnp.dot(h.astype(jnp.bfloat16), w3.astype(jnp.bfloat16),
                       preferred_element_type=jnp.float32) + b3
    assert jnp.allclose(out, ref_bf16, atol=3e-3, rtol=3e-3)

    # Reference 2: full-f32 math (original PyTorch semantics), loose tolerance for bf16 MXU.
    h = jnp.tanh(xf @ w1 + b1)
    h = jnp.tanh(h @ w2 + b2)
    ref_f32 = h @ w3 + b3
    assert jnp.allclose(out, ref_f32, atol=1e-1, rtol=1e-1)

    print("KERNEL_OK")
</pallas_src>

<mosaic_0001>
module attributes {stable_mosaic.version = 11 : i64} {
  func.func @_tanh_mlp_kernel(%arg0: i32, %arg1: memref<16x256xbf16, #tpu.memory_space<vmem>>, %arg2: memref<256x512xbf16, #tpu.memory_space<vmem>>, %arg3: memref<640x128xbf16, #tpu.memory_space<vmem>>, %arg4: memref<8x512xf32, #tpu.memory_space<vmem>>, %arg5: memref<16x128xf32, #tpu.memory_space<vmem>>) attributes {dimension_semantics = [#tpu.dimension_semantics<parallel>], iteration_bounds = array<i64: 2>, scalar_prefetch = 0 : i64, scratch_operands = 0 : i64, tpu.core_type = #tpu.core_type<tc>, window_params = [{transform_indices = @transform_0, window_bounds = array<i64: 16, 256>}, {pipeline_mode = #tpu.pipeline_mode<synchronous>, transform_indices = @transform_1, window_bounds = array<i64: 256, 512>}, {pipeline_mode = #tpu.pipeline_mode<synchronous>, transform_indices = @transform_2, window_bounds = array<i64: 640, 128>}, {pipeline_mode = #tpu.pipeline_mode<synchronous>, transform_indices = @transform_3, window_bounds = array<i64: 8, 512>}, {transform_indices = @transform_4, window_bounds = array<i64: 16, 128>}]} {
    %c0 = arith.constant 0 : index
    %c0_0 = arith.constant 0 : index
    %0 = vector.load %arg1[%c0, %c0_0] : memref<16x256xbf16, #tpu.memory_space<vmem>>, vector<16x256xbf16>
    %c0_1 = arith.constant 0 : index
    %c0_2 = arith.constant 0 : index
    %1 = vector.load %arg4[%c0_1, %c0_2] : memref<8x512xf32, #tpu.memory_space<vmem>>, vector<1x512xf32>
    %c1 = arith.constant 1 : index
    %c0_3 = arith.constant 0 : index
    %2 = vector.load %arg4[%c1, %c0_3] : memref<8x512xf32, #tpu.memory_space<vmem>>, vector<1x128xf32>
    %c2 = arith.constant 2 : index
    %c0_4 = arith.constant 0 : index
    %3 = vector.load %arg4[%c2, %c0_4] : memref<8x512xf32, #tpu.memory_space<vmem>>, vector<1x128xf32>
    %c0_5 = arith.constant 0 : index
    %c0_6 = arith.constant 0 : index
    %4 = vector.load %arg2[%c0_5, %c0_6] : memref<256x512xbf16, #tpu.memory_space<vmem>>, vector<256x512xbf16>
    %cst = arith.constant dense<0.000000e+00> : vector<16x512xf32>
    %5 = tpu.matmul %0, %4, %cst {dimension_numbers = #tpu.dot_dimension_numbers<[1], [0], [0], [1], [0, 0, 1, 1], [], []>} : vector<16x256xbf16>, vector<256x512xbf16>, vector<16x512xf32> -> vector<16x512xf32>
    %6 = vector.broadcast %1 : vector<1x512xf32> to vector<16x512xf32>
    %7 = arith.addf %5, %6 : vector<16x512xf32>
    %8 = math.tanh %7 : vector<16x512xf32>
    %9 = arith.truncf %8 : vector<16x512xf32> to vector<16x512xbf16>
    %c0_7 = arith.constant 0 : index
    %c0_8 = arith.constant 0 : index
    %10 = vector.load %arg3[%c0_7, %c0_8] : memref<640x128xbf16, #tpu.memory_space<vmem>>, vector<512x128xbf16>
    %cst_9 = arith.constant dense<0.000000e+00> : vector<16x128xf32>
    %11 = tpu.matmul %9, %10, %cst_9 {dimension_numbers = #tpu.dot_dimension_numbers<[1], [0], [0], [1], [0, 0, 1, 1], [], []>} : vector<16x512xbf16>, vector<512x128xbf16>, vector<16x128xf32> -> vector<16x128xf32>
    %12 = vector.broadcast %2 : vector<1x128xf32> to vector<16x128xf32>
    %13 = arith.addf %11, %12 : vector<16x128xf32>
    %14 = math.tanh %13 : vector<16x128xf32>
    %15 = arith.truncf %14 : vector<16x128xf32> to vector<16x128xbf16>
    %c512 = arith.constant 512 : index
    %c0_10 = arith.constant 0 : index
    %16 = vector.load %arg3[%c512, %c0_10] : memref<640x128xbf16, #tpu.memory_space<vmem>>, vector<128x128xbf16>
    %cst_11 = arith.constant dense<0.000000e+00> : vector<16x128xf32>
    %17 = tpu.matmul %15, %16, %cst_11 {dimension_numbers = #tpu.dot_dimension_numbers<[1], [0], [0], [1], [0, 0, 1, 1], [], []>} : vector<16x128xbf16>, vector<128x128xbf16>, vector<16x128xf32> -> vector<16x128xf32>
    %18 = vector.broadcast %3 : vector<1x128xf32> to vector<16x128xf32>
    %19 = arith.addf %17, %18 : vector<16x128xf32>
    %c0_12 = arith.constant 0 : index
    %c0_13 = arith.constant 0 : index
    %20 = vector.load %arg5[%c0_12, %c0_13] : memref<16x128xf32, #tpu.memory_space<vmem>>, vector<16x128xf32>
    tpu.vector_store %arg5[%c0_12, %c0_13], %19 {strides = array<i32>} : memref<16x128xf32, #tpu.memory_space<vmem>>, vector<16x128xf32>,
    return
  }
  func.func @transform_0(%arg0: i32) -> (i32, i32) {
    %c0_i32 = arith.constant 0 : i32
    %c0_i32_0 = arith.constant 0 : i32
    return %arg0, %c0_i32 : i32, i32
  }
  func.func @transform_1(%arg0: i32) -> (i32, i32) {
    %c0_i32 = arith.constant 0 : i32
    %c0_i32_0 = arith.constant 0 : i32
    %c0_i32_1 = arith.constant 0 : i32
    return %c0_i32, %c0_i32_0 : i32, i32
  }
  func.func @transform_2(%arg0: i32) -> (i32, i32) {
    %c0_i32 = arith.constant 0 : i32
    %c0_i32_0 = arith.constant 0 : i32
    %c0_i32_1 = arith.constant 0 : i32
    return %c0_i32, %c0_i32_0 : i32, i32
  }
  func.func @transform_3(%arg0: i32) -> (i32, i32) {
    %c0_i32 = arith.constant 0 : i32
    %c0_i32_0 = arith.constant 0 : i32
    %c0_i32_1 = arith.constant 0 : i32
    return %c0_i32, %c0_i32_0 : i32, i32
  }
  func.func @transform_4(%arg0: i32) -> (i32, i32) {
    %c0_i32 = arith.constant 0 : i32
    %c0_i32_0 = arith.constant 0 : i32
    return %arg0, %c0_i32 : i32, i32
  }
}

</mosaic_0001>

<llo_original>
// kernel: tpu_custom_call.1
$region0: #{tpu_custom_call.1}
  #allocation0 [shape = 'u32[]', space=smem, size = 0x4, offset = 0x4, fixed_abs, tag = 'smem constant byte address 0x4 - core index']
  #allocation1 [shape = 'u32[144,128]{1,0:T(1,128)}', space=vmem, size = 0x12000, scoped, tag = 'internal scratch']
  %s0 = inlined_call_operand.hbm [shape: bf16[32,256], index: 0, kind: input, shape index: {}]
  %s1 = inlined_call_operand.hbm [shape: bf16[256,512], index: 1, kind: input, shape index: {}]
  %s2 = inlined_call_operand.hbm [shape: bf16[640,128], index: 2, kind: input, shape index: {}]
  %s3 = inlined_call_operand.hbm [shape: f32[8,512], index: 3, kind: input, shape index: {}]
  %s4 = inlined_call_operand.hbm [shape: f32[32,128], index: 4, kind: output, shape index: {}]
  %s5 = sld [smem:[#allocation0]]
  $region65: #{tpu_custom_call.1} parent=0
    _
  %s7 = ssub.s32 1, %s5
  %s8 = scalar_select 0, %s7, %s5
  $region1: #{tpu_custom_call.1} parent=0
    #allocation2 [shape = 'u8[16384]{0}', space=vmem, size = 0x4000, scoped, tag = 'input window, operand 0']
    #allocation3 [shape = 's32[2]{0}', space=sflag, size = 0x8, scoped, tag = 'scoped memory for tpu_custom_call.1']
    #allocation4 [shape = 's32[2]{0}', space=sflag, size = 0x8, scoped, tag = 'scoped memory for tpu_custom_call.1']
    #allocation5 [shape = 'u8[262144]{0}', space=vmem, size = 0x40000, scoped, tag = 'input window, operand 1, single buffered']
    #allocation6 [shape = 's32[1]{0}', space=sflag, size = 0x4, scoped, tag = 'scoped memory for tpu_custom_call.1']
    #allocation7 [shape = 'u8[163840]{0}', space=vmem, size = 0x28000, scoped, tag = 'input window, operand 2, single buffered']
    #allocation8 [shape = 'u8[16384]{0}', space=vmem, size = 0x4000, scoped, tag = 'input window, operand 3, single buffered']
    #allocation9 [shape = 's32[1]{0}', space=sflag, size = 0x4, scoped, tag = 'scoped memory for tpu_custom_call.1']
    #allocation10 [shape = 'u8[16384]{0}', space=vmem, size = 0x4000, scoped, tag = 'output window, operand 0']
    %9 = vsyncpa [#allocation3], 0
    %s10 = scalar_lea.sflag [#allocation3], 1
    %11 = vsyncpa %s10, 0
    %12 = vsyncpa [#allocation6], 0
    %13 = vsyncpa [#allocation9], 0
    %14 = vsyncpa [#allocation4], 0
    %s15 = scalar_lea.sflag [#allocation4], 1
    %16 = vsyncpa %s15, 0
    loop: start=0, step=1, limit=4
    $region2: #{tpu_custom_call.1} parent=1 // loop_pre_header
      _
    $region3: #{tpu_custom_call.1} parent=1 // loop_header
      %s18 = sphi 0, %s22
      %p19 = scmp.ge.s32.totalorder %s18, 4
      %s28 = sphi 0, %s30
      %s31 = sphi 0, %s28
      %s32 = sphi 0, %s31
      %s48 = sphi 0, %s32
      %s52 = sphi 0, %s52
      %s54 = sphi 0, %s52
      %s55 = sphi 0, %s54
      %s69 = sphi 0, %s55
      %s73 = sphi 0, %s73
      %s75 = sphi 0, %s73
      %s76 = sphi 0, %s75
      %s90 = sphi 0, %s76
      %s94 = sphi 0, %s94
      %s96 = sphi 0, %s94
      %s97 = sphi 0, %s96
      %s111 = sphi 0, %s97
      %s117 = sphi 0, %s119
      %s120 = sphi 0, %s117
      %s121 = sphi 0, %s120
      %s137 = sphi 0, %s121
    $region4: #{tpu_custom_call.1} parent=1 // loop_header_branch
      %21 = sbr.rel (%p19) target = $region8
    $region5: #{tpu_custom_call.1} parent=1 // loop_body
      %s23 = ssub.s32 %s18, 1
      %s24 = ssub.s32 %s18, 2
      %s25 = sadd.s32 %s18, 1
      %s26 = ssub.s32 %s18, %s25
      %p27 = scmp.eq.s32.totalorder %s26, 0
      %s29 = sadd.s32 %s28, 1
      %s30 = scalar_select %p27, %s28, %s29
      %p33 = pneg %p27
      %p34 = scmp.eq.s32.totalorder %s18, 1
      %p35 = por %p33, %p34
      %p36 = scmp.ne.s32.totalorder %s28, %s31
      %p37 = scmp.eq.s32.totalorder %s18, 0
      %p38 = por %p36, %p37
      %p39 = scmp.ne.s32.totalorder %s28, %s31
      %p40 = scmp.eq.s32.totalorder %s23, 1
      %p41 = por %p39, %p40
      %p42 = scmp.ne.s32.totalorder %s31, %s32
      %p43 = scmp.eq.s32.totalorder %s23, 0
      %p44 = por %p42, %p43
      %p45 = scmp.ne.s32.totalorder %s31, %s32
      %p46 = scmp.eq.s32.totalorder %s24, 1
      %p47 = por %p45, %p46
      %p49 = scmp.ne.s32.totalorder %s32, %s48
      %p50 = scmp.eq.s32.totalorder %s24, 0
      %p51 = por %p49, %p50
      %s53 = sadd.s32 %s52, 1
      %p56 = scmp.eq.s32.totalorder %s18, 1
      %p57 = scmp.ne.s32.totalorder %s52, %s54
      %p58 = scmp.eq.s32.totalorder %s18, 0
      %p59 = por %p57, %p58
      %p60 = scmp.ne.s32.totalorder %s52, %s54
      %p61 = scmp.eq.s32.totalorder %s23, 1
      %p62 = por %p60, %p61
      %p63 = scmp.ne.s32.totalorder %s54, %s55
      %p64 = scmp.eq.s32.totalorder %s23, 0
      %p65 = por %p63, %p64
      %p66 = scmp.ne.s32.totalorder %s54, %s55
      %p67 = scmp.eq.s32.totalorder %s24, 1
      %p68 = por %p66, %p67
      %p70 = scmp.ne.s32.totalorder %s55, %s69
      %p71 = scmp.eq.s32.totalorder %s24, 0
      %p72 = por %p70, %p71
      %s74 = sadd.s32 %s73, 1
      %p77 = scmp.eq.s32.totalorder %s18, 1
      %p78 = scmp.ne.s32.totalorder %s73, %s75
      %p79 = scmp.eq.s32.totalorder %s18, 0
      %p80 = por %p78, %p79
      %p81 = scmp.ne.s32.totalorder %s73, %s75
      %p82 = scmp.eq.s32.totalorder %s23, 1
      %p83 = por %p81, %p82
      %p84 = scmp.ne.s32.totalorder %s75, %s76
      %p85 = scmp.eq.s32.totalorder %s23, 0
      %p86 = por %p84, %p85
      %p87 = scmp.ne.s32.totalorder %s75, %s76
      %p88 = scmp.eq.s32.totalorder %s24, 1
      %p89 = por %p87, %p88
      %p91 = scmp.ne.s32.totalorder %s76, %s90
      %p92 = scmp.eq.s32.totalorder %s24, 0
      %p93 = por %p91, %p92
      %s95 = sadd.s32 %s94, 1
      %p98 = scmp.eq.s32.totalorder %s18, 1
      %p99 = scmp.ne.s32.totalorder %s94, %s96
      %p100 = scmp.eq.s32.totalorder %s18, 0
      %p101 = por %p99, %p100
      %p102 = scmp.ne.s32.totalorder %s94, %s96
      %p103 = scmp.eq.s32.totalorder %s23, 1
      %p104 = por %p102, %p103
      %p105 = scmp.ne.s32.totalorder %s96, %s97
      %p106 = scmp.eq.s32.totalorder %s23, 0
      %p107 = por %p105, %p106
      %p108 = scmp.ne.s32.totalorder %s96, %s97
      %p109 = scmp.eq.s32.totalorder %s24, 1
      %p110 = por %p108, %p109
      %p112 = scmp.ne.s32.totalorder %s97, %s111
      %p113 = scmp.eq.s32.totalorder %s24, 0
      %p114 = por %p112, %p113
      %s115 = ssub.s32 %s18, %s25
      %p116 = scmp.eq.s32.totalorder %s115, 0
      %s118 = sadd.s32 %s117, 1
      %s119 = scalar_select %p116, %s117, %s118
      %p122 = pneg %p116
      %p123 = scmp.eq.s32.totalorder %s18, 1
      %p124 = por %p122, %p123
      %p125 = scmp.ne.s32.totalorder %s117, %s120
      %p126 = scmp.eq.s32.totalorder %s18, 0
      %p127 = por %p125, %p126
      %p128 = scmp.ne.s32.totalorder %s117, %s120
      %p129 = scmp.eq.s32.totalorder %s23, 1
      %p130 = por %p128, %p129
      %p131 = scmp.ne.s32.totalorder %s120, %s121
      %p132 = scmp.eq.s32.totalorder %s23, 0
      %p133 = por %p131, %p132
      %p134 = scmp.ne.s32.totalorder %s120, %s121
      %p135 = scmp.eq.s32.totalorder %s24, 1
      %p136 = por %p134, %p135
      %p138 = scmp.ne.s32.totalorder %s121, %s137
      %p139 = scmp.eq.s32.totalorder %s24, 0
      %p140 = por %p138, %p139
      %p141 = scmp.le.s32.totalorder 1, %s18
      %p142 = scmp.lt.s32.totalorder %s18, 3
      %p143 = pnand %p141, %p142
      %p144 = pneg %p143
      // Predicated region
      $region9: #{tpu_custom_call.1} parent=5 // pred_check
        _
      $region10: #{tpu_custom_call.1} parent=5 // pred_check_branch
        %146 = sbr.rel (%p143) target = $region12
      $region11: #{tpu_custom_call.1} parent=5 // pred_region
        %s147 = ssub.s32 %s18, 1
        // Predicated region
        $region13: #{tpu_custom_call.1} parent=11 // pred_check
          %p148 = pneg %p65
        $region14: #{tpu_custom_call.1} parent=11 // pred_check_branch
          %150 = sbr.rel (%p148) target = $region16
        $region15: #{tpu_custom_call.1} parent=11 // pred_region
          %s152 = ssub.s32 8192, 8192
          %153 = vsyncadd [#allocation6], %s152
          %s154 = sshll.u32 [#allocation5], 4
          %s155 = int_to_ptr.vmem [resolvable:$true] %s154
          %160 = dma.hbm_to_vmem [thread:$0]  %s1, 8192, %s155, [#allocation6], 256, 256, 16
        $region16: #{tpu_custom_call.1} parent=11 // pred_fallthru
          _
        // Predicated region
        $region17: #{tpu_custom_call.1} parent=11 // pred_check
          %p161 = pneg %p86
        $region18: #{tpu_custom_call.1} parent=11 // pred_check_branch
          %163 = sbr.rel (%p161) target = $region20
        $region19: #{tpu_custom_call.1} parent=11 // pred_region
          %s165 = ssub.s32 5120, 5120
          %166 = vsyncadd [#allocation6], %s165
          %s167 = sshll.u32 [#allocation7], 4
          %s168 = int_to_ptr.vmem [resolvable:$true] %s167
          %173 = dma.hbm_to_vmem [thread:$0]  %s2, 5120, %s168, [#allocation6], 64, 64, 4
        $region20: #{tpu_custom_call.1} parent=11 // pred_fallthru
          _
        // Predicated region
        $region21: #{tpu_custom_call.1} parent=11 // pred_check
          %p174 = pneg %p107
        $region22: #{tpu_custom_call.1} parent=11 // pred_check_branch
          %176 = sbr.rel (%p174) target = $region24
        $region23: #{tpu_custom_call.1} parent=11 // pred_region
          %s178 = ssub.s32 512, 512
          %179 = vsyncadd [#allocation9], %s178
          %s181 = sshll.u32 [#allocation8], 4
          %s182 = int_to_ptr.vmem [resolvable:$true] %s181
          %184 = dma.hbm_to_vmem [thread:$0]  %s3, 512, %s182, [#allocation9]
        $region24: #{tpu_custom_call.1} parent=11 // pred_fallthru
          _
      $region12: #{tpu_custom_call.1} parent=5 // pred_fallthru
        _
      %p185 = scmp.lt.s32.totalorder %s18, 2
      // Predicated region
      $region25: #{tpu_custom_call.1} parent=5 // pred_check
        %p186 = pneg %p185
      $region26: #{tpu_custom_call.1} parent=5 // pred_check_branch
        %188 = sbr.rel (%p186) target = $region28
      $region27: #{tpu_custom_call.1} parent=5 // pred_region
        // Predicated region
        $region29: #{tpu_custom_call.1} parent=27 // pred_check
          %p189 = pneg %p38
        $region30: #{tpu_custom_call.1} parent=27 // pred_check_branch
          %191 = sbr.rel (%p189) target = $region32
        $region31: #{tpu_custom_call.1} parent=27 // pred_region
          %s192 = sand.u32 %s28, 1
          %s193 = scalar_lea.sflag [#allocation3], %s192
          %s194 = sand.u32 %s28, 1
          %s195 = smul.addr %s194, 16
          %s196 = scalar_lea.vmem [#allocation2], %s195
          %s197 = smul.u32 2, %s18
          %s199 = ssub.s32 256, 256
          %200 = vsyncadd %s193, %s199
          %s201 = smul.addr %s197, 2
          %s202 = smul.addr %s201, 64
          %s203 = scalar_lea.hbm %s0, %s202
          %s204 = sshll.u32 %s196, 4
          %s205 = int_to_ptr.vmem [resolvable:$true] %s204
          %210 = dma.hbm_to_vmem [thread:$0]  %s203, 256, %s205, %s193, 128, 128, 8
        $region32: #{tpu_custom_call.1} parent=27 // pred_fallthru
          _
      $region28: #{tpu_custom_call.1} parent=5 // pred_fallthru
        _
      %p211 = scmp.le.s32.totalorder 1, %s18
      %p212 = scmp.lt.s32.totalorder %s18, 3
      %p213 = pnand %p211, %p212
      %p214 = pneg %p213
      // Predicated region
      $region33: #{tpu_custom_call.1} parent=5 // pred_check
        _
      $region34: #{tpu_custom_call.1} parent=5 // pred_check_branch
        %216 = sbr.rel (%p213) target = $region36
      $region35: #{tpu_custom_call.1} parent=5 // pred_region
        %s217 = ssub.s32 %s18, 1
        %s218 = sand.u32 %s31, 1
        %s219 = scalar_lea.sflag [#allocation3], %s218
        %s220 = sand.u32 %s31, 1
        %s221 = smul.addr %s220, 16
        %s222 = scalar_lea.vmem [#allocation2], %s221
        // Predicated region
        $region37: #{tpu_custom_call.1} parent=35 // pred_check
          %p223 = pneg %p44
        $region38: #{tpu_custom_call.1} parent=35 // pred_check_branch
          %225 = sbr.rel (%p223) target = $region40
        $region39: #{tpu_custom_call.1} parent=35 // pred_region
          %226 = dma.done %s219, 256
        $region40: #{tpu_custom_call.1} parent=35 // pred_fallthru
          _
        // Predicated region
        $region41: #{tpu_custom_call.1} parent=35 // pred_check
          %p227 = pneg %p65
        $region42: #{tpu_custom_call.1} parent=35 // pred_check_branch
          %229 = sbr.rel (%p227) target = $region44
        $region43: #{tpu_custom_call.1} parent=35 // pred_region
          %230 = dma.done [#allocation6], 8192
        $region44: #{tpu_custom_call.1} parent=35 // pred_fallthru
          _
        // Predicated region
        $region45: #{tpu_custom_call.1} parent=35 // pred_check
          %p231 = pneg %p86
        $region46: #{tpu_custom_call.1} parent=35 // pred_check_branch
          %233 = sbr.rel (%p231) target = $region48
        $region47: #{tpu_custom_call.1} parent=35 // pred_region
          %234 = dma.done [#allocation6], 5120
        $region48: #{tpu_custom_call.1} parent=35 // pred_fallthru
          _
        // Predicated region
        $region49: #{tpu_custom_call.1} parent=35 // pred_check
          %p235 = pneg %p107
        $region50: #{tpu_custom_call.1} parent=35 // pred_check_branch
          %237 = sbr.rel (%p235) target = $region52
        $region51: #{tpu_custom_call.1} parent=35 // pred_region
          %238 = dma.done [#allocation9], 512
        $region52: #{tpu_custom_call.1} parent=35 // pred_fallthru
          _
        %s239 = sand.u32 %s31, 1
        %s240 = scalar_lea.sflag [#allocation3], %s239
        %s241 = sand.u32 %s31, 1
        %s242 = smul.addr %s241, 16
        %s243 = scalar_lea.vmem [#allocation2], %s242
        %p244 = pneg %p44
        %p245 = pneg %p41
        %p246 = pneg %p65
        %p247 = pneg %p62
        %p248 = pneg %p86
        %p249 = pneg %p83
        %p250 = pneg %p107
        %p251 = pneg %p104
        %p252 = pneg %p133
        %p253 = pneg %p130
        %s254 = sand.u32 %s120, 1
        %s255 = scalar_lea.sflag [#allocation4], %s254
        %s256 = sand.u32 %s120, 1
        %s257 = smul.addr %s256, 16
        %s258 = scalar_lea.vmem [#allocation10], %s257
        %s259 = smul.u32 2, %s23
        %s260 = smul.u32 2, %s23
        %v262 = vld [vmem:[%s222] sm:$0xff]
        %v263 = vld [vmem:[%s222 + $0x8] sm:$0xff]
        %v264 = vld [vmem:[#allocation8] ss:$8 sm:$0xf]
        %v265 = vld [vmem:[#allocation8 + $0x1] ss:$0 sm:$0xff]
        %v266 = vld [vmem:[#allocation8 + $0x2] ss:$0 sm:$0xff]
        %v267 = vld [vmem:[#allocation5] sm:$0xff]
        %v268 = vld [vmem:[#allocation5 + $0x8] sm:$0xff]
        %v269 = vld [vmem:[#allocation5 + $0x10] sm:$0xff]
        %v270 = vld [vmem:[#allocation5 + $0x18] sm:$0xff]
        %v271 = vld [vmem:[#allocation5 + $0x20] sm:$0xff]
        %v272 = vld [vmem:[#allocation5 + $0x28] sm:$0xff]
        %v273 = vld [vmem:[#allocation5 + $0x30] sm:$0xff]
        %v274 = vld [vmem:[#allocation5 + $0x38] sm:$0xff]
        %v275 = vld [vmem:[#allocation5 + $0x40] sm:$0xff]
        %v276 = vld [vmem:[#allocation5 + $0x48] sm:$0xff]
        %v277 = vld [vmem:[#allocation5 + $0x50] sm:$0xff]
        %v278 = vld [vmem:[#allocation5 + $0x58] sm:$0xff]
        %v279 = vld [vmem:[#allocation5 + $0x60] sm:$0xff]
        %v280 = vld [vmem:[#allocation5 + $0x68] sm:$0xff]
        %v281 = vld [vmem:[#allocation5 + $0x70] sm:$0xff]
        %v282 = vld [vmem:[#allocation5 + $0x78] sm:$0xff]
        %v283 = vld [vmem:[#allocation5 + $0x80] sm:$0xff]
        %v284 = vld [vmem:[#allocation5 + $0x88] sm:$0xff]
        %v285 = vld [vmem:[#allocation5 + $0x90] sm:$0xff]
        %v286 = vld [vmem:[#allocation5 + $0x98] sm:$0xff]
        %v287 = vld [vmem:[#allocation5 + $0xa0] sm:$0xff]
        %v288 = vld [vmem:[#allocation5 + $0xa8] sm:$0xff]
        %v289 = vld [vmem:[#allocation5 + $0xb0] sm:$0xff]
        %v290 = vld [vmem:[#allocation5 + $0xb8] sm:$0xff]
        %v291 = vld [vmem:[#allocation5 + $0xc0] sm:$0xff]
        %v292 = vld [vmem:[#allocation5 + $0xc8] sm:$0xff]
        %v293 = vld [vmem:[#allocation5 + $0xd0] sm:$0xff]
        %v294 = vld [vmem:[#allocation5 + $0xd8] sm:$0xff]
        %v295 = vld [vmem:[#allocation5 + $0xe0] sm:$0xff]
        %v296 = vld [vmem:[#allocation5 + $0xe8] sm:$0xff]
        %v297 = vld [vmem:[#allocation5 + $0xf0] sm:$0xff]
        %v298 = vld [vmem:[#allocation5 + $0xf8] sm:$0xff]
        %v299 = vld [vmem:[#allocation5 + $0x100] sm:$0xff]
        %v300 = vld [vmem:[#allocation5 + $0x108] sm:$0xff]
        %v301 = vld [vmem:[#allocation5 + $0x110] sm:$0xff]
        %v302 = vld [vmem:[#allocation5 + $0x118] sm:$0xff]
        %v303 = vld [vmem:[#allocation5 + $0x120] sm:$0xff]
        %v304 = vld [vmem:[#allocation5 + $0x128] sm:$0xff]
        %v305 = vld [vmem:[#allocation5 + $0x130] sm:$0xff]
        %v306 = vld [vmem:[#allocation5 + $0x138] sm:$0xff]
        %v307 = vld [vmem:[#allocation5 + $0x140] sm:$0xff]
        %v308 = vld [vmem:[#allocation5 + $0x148] sm:$0xff]
        %v309 = vld [vmem:[#allocation5 + $0x150] sm:$0xff]
        %v310 = vld [vmem:[#allocation5 + $0x158] sm:$0xff]
        %v311 = vld [vmem:[#allocation5 + $0x160] sm:$0xff]
        %v312 = vld [vmem:[#allocation5 + $0x168] sm:$0xff]
        %v313 = vld [vmem:[#allocation5 + $0x170] sm:$0xff]
        %v314 = vld [vmem:[#allocation5 + $0x178] sm:$0xff]
        %v315 = vld [vmem:[#allocation5 + $0x180] sm:$0xff]
        %v316 = vld [vmem:[#allocation5 + $0x188] sm:$0xff]
        %v317 = vld [vmem:[#allocation5 + $0x190] sm:$0xff]
        %v318 = vld [vmem:[#allocation5 + $0x198] sm:$0xff]
        %v319 = vld [vmem:[#allocation5 + $0x1a0] sm:$0xff]
        %v320 = vld [vmem:[#allocation5 + $0x1a8] sm:$0xff]
        %v321 = vld [vmem:[#allocation5 + $0x1b0] sm:$0xff]
        %v322 = vld [vmem:[#allocation5 + $0x1b8] sm:$0xff]
        %v323 = vld [vmem:[#allocation5 + $0x1c0] sm:$0xff]
        %v324 = vld [vmem:[#allocation5 + $0x1c8] sm:$0xff]
        %v325 = vld [vmem:[#allocation5 + $0x1d0] sm:$0xff]
        %v326 = vld [vmem:[#allocation5 + $0x1d8] sm:$0xff]
        %v327 = vld [vmem:[#allocation5 + $0x1e0] sm:$0xff]
        %v328 = vld [vmem:[#allocation5 + $0x1e8] sm:$0xff]
        %v329 = vld [vmem:[#allocation5 + $0x1f0] sm:$0xff]
        %v330 = vld [vmem:[#allocation5 + $0x1f8] sm:$0xff]
        %v332 = vlaneseq
        %v333 = vshrl.u32 %v332, 7
        %v334 = vsub.s32 0, %v333
        %v335 = vrot.slane %v264, %v334
        %v336 = vlaneseq
        %v337 = vshrl.u32 %v336, 7
        %v338 = vsub.s32 1, %v337
        %v339 = vrot.slane %v264, %v338
        %v340 = vlaneseq
        %v341 = vshrl.u32 %v340, 7
        %v342 = vsub.s32 2, %v341
        %v343 = vrot.slane %v264, %v342
        %v344 = vlaneseq
        %v345 = vshrl.u32 %v344, 7
        %v346 = vsub.s32 3, %v345
        %v347 = vrot.slane %v264, %v346
        %v354 = vunpack.c.l.b16 %v262
        %v355 = vunpack.c.h.b16 %v262
        %v356 = vunpack.c.l.b16 %v263
        %v357 = vunpack.c.h.b16 %v263
        %v358 = vpack.c.b16 %v356, %v354
        %v359 = vpack.c.b16 %v357, %v355
        %v426 = vunpack.c.l.b16 %v267
        %v427 = vunpack.c.h.b16 %v267
        %v428 = vunpack.c.l.b16 %v268
        %v429 = vunpack.c.h.b16 %v268
        %v430 = vunpack.c.l.b16 %v269
        %v431 = vunpack.c.h.b16 %v269
        %v432 = vunpack.c.l.b16 %v270
        %v433 = vunpack.c.h.b16 %v270
        %v434 = vunpack.c.l.b16 %v271
        %v435 = vunpack.c.h.b16 %v271
        %v436 = vunpack.c.l.b16 %v272
        %v437 = vunpack.c.h.b16 %v272
        %v438 = vunpack.c.l.b16 %v273
        %v439 = vunpack.c.h.b16 %v273
        %v440 = vunpack.c.l.b16 %v274
        %v441 = vunpack.c.h.b16 %v274
        %v442 = vunpack.c.l.b16 %v275
        %v443 = vunpack.c.h.b16 %v275
        %v444 = vunpack.c.l.b16 %v276
        %v445 = vunpack.c.h.b16 %v276
        %v446 = vunpack.c.l.b16 %v277
        %v447 = vunpack.c.h.b16 %v277
        %v448 = vunpack.c.l.b16 %v278
        %v449 = vunpack.c.h.b16 %v278
        %v450 = vunpack.c.l.b16 %v279
        %v451 = vunpack.c.h.b16 %v279
        %v452 = vunpack.c.l.b16 %v280
        %v453 = vunpack.c.h.b16 %v280
        %v454 = vunpack.c.l.b16 %v281
        %v455 = vunpack.c.h.b16 %v281
        %v456 = vunpack.c.l.b16 %v282
        %v457 = vunpack.c.h.b16 %v282
        %v458 = vunpack.c.l.b16 %v283
        %v459 = vunpack.c.h.b16 %v283
        %v460 = vunpack.c.l.b16 %v284
        %v461 = vunpack.c.h.b16 %v284
        %v462 = vunpack.c.l.b16 %v285
        %v463 = vunpack.c.h.b16 %v285
        %v464 = vunpack.c.l.b16 %v286
        %v465 = vunpack.c.h.b16 %v286
        %v466 = vunpack.c.l.b16 %v287
        %v467 = vunpack.c.h.b16 %v287
        %v468 = vunpack.c.l.b16 %v288
        %v469 = vunpack.c.h.b16 %v288
        %v470 = vunpack.c.l.b16 %v289
        %v471 = vunpack.c.h.b16 %v289
        %v472 = vunpack.c.l.b16 %v290
        %v473 = vunpack.c.h.b16 %v290
        %v474 = vunpack.c.l.b16 %v291
        %v475 = vunpack.c.h.b16 %v291
        %v476 = vunpack.c.l.b16 %v292
        %v477 = vunpack.c.h.b16 %v292
        %v478 = vunpack.c.l.b16 %v293
        %v479 = vunpack.c.h.b16 %v293
        %v480 = vunpack.c.l.b16 %v294
        %v481 = vunpack.c.h.b16 %v294
        %v482 = vunpack.c.l.b16 %v295
        %v483 = vunpack.c.h.b16 %v295
        %v484 = vunpack.c.l.b16 %v296
        %v485 = vunpack.c.h.b16 %v296
        %v486 = vunpack.c.l.b16 %v297
        %v487 = vunpack.c.h.b16 %v297
        %v488 = vunpack.c.l.b16 %v298
        %v489 = vunpack.c.h.b16 %v298
        %v490 = vunpack.c.l.b16 %v299
        %v491 = vunpack.c.h.b16 %v299
        %v492 = vunpack.c.l.b16 %v300
        %v493 = vunpack.c.h.b16 %v300
        %v494 = vunpack.c.l.b16 %v301
        %v495 = vunpack.c.h.b16 %v301
        %v496 = vunpack.c.l.b16 %v302
        %v497 = vunpack.c.h.b16 %v302
        %v498 = vunpack.c.l.b16 %v303
        %v499 = vunpack.c.h.b16 %v303
        %v500 = vunpack.c.l.b16 %v304
        %v501 = vunpack.c.h.b16 %v304
        %v502 = vunpack.c.l.b16 %v305
        %v503 = vunpack.c.h.b16 %v305
        %v504 = vunpack.c.l.b16 %v306
        %v505 = vunpack.c.h.b16 %v306
        %v506 = vunpack.c.l.b16 %v307
        %v507 = vunpack.c.h.b16 %v307
        %v508 = vunpack.c.l.b16 %v308
        %v509 = vunpack.c.h.b16 %v308
        %v510 = vunpack.c.l.b16 %v309
        %v511 = vunpack.c.h.b16 %v309
        %v512 = vunpack.c.l.b16 %v310
        %v513 = vunpack.c.h.b16 %v310
        %v514 = vunpack.c.l.b16 %v311
        %v515 = vunpack.c.h.b16 %v311
        %v516 = vunpack.c.l.b16 %v312
        %v517 = vunpack.c.h.b16 %v312
        %v518 = vunpack.c.l.b16 %v313
        %v519 = vunpack.c.h.b16 %v313
        %v520 = vunpack.c.l.b16 %v314
        %v521 = vunpack.c.h.b16 %v314
        %v522 = vunpack.c.l.b16 %v315
        %v523 = vunpack.c.h.b16 %v315
        %v524 = vunpack.c.l.b16 %v316
        %v525 = vunpack.c.h.b16 %v316
        %v526 = vunpack.c.l.b16 %v317
        %v527 = vunpack.c.h.b16 %v317
        %v528 = vunpack.c.l.b16 %v318
        %v529 = vunpack.c.h.b16 %v318
        %v530 = vunpack.c.l.b16 %v319
        %v531 = vunpack.c.h.b16 %v319
        %v532 = vunpack.c.l.b16 %v320
        %v533 = vunpack.c.h.b16 %v320
        %v534 = vunpack.c.l.b16 %v321
        %v535 = vunpack.c.h.b16 %v321
        %v536 = vunpack.c.l.b16 %v322
        %v537 = vunpack.c.h.b16 %v322
        %v538 = vunpack.c.l.b16 %v323
        %v539 = vunpack.c.h.b16 %v323
        %v540 = vunpack.c.l.b16 %v324
        %v541 = vunpack.c.h.b16 %v324
        %v542 = vunpack.c.l.b16 %v325
        %v543 = vunpack.c.h.b16 %v325
        %v544 = vunpack.c.l.b16 %v326
        %v545 = vunpack.c.h.b16 %v326
        %v546 = vunpack.c.l.b16 %v327
        %v547 = vunpack.c.h.b16 %v327
        %v548 = vunpack.c.l.b16 %v328
        %v549 = vunpack.c.h.b16 %v328
        %v550 = vunpack.c.l.b16 %v329
        %v551 = vunpack.c.h.b16 %v329
        %v552 = vunpack.c.l.b16 %v330
        %v553 = vunpack.c.h.b16 %v330
        %v554 = vpack.c.b16 %v430, %v426
        %v555 = vpack.c.b16 %v431, %v427
        %v556 = vpack.c.b16 %v432, %v428
        %v557 = vpack.c.b16 %v433, %v429
        %v558 = vpack.c.b16 %v438, %v434
        %v559 = vpack.c.b16 %v439, %v435
        %v560 = vpack.c.b16 %v440, %v436
        %v561 = vpack.c.b16 %v441, %v437
        %v562 = vpack.c.b16 %v446, %v442
        %v563 = vpack.c.b16 %v447, %v443
        %v564 = vpack.c.b16 %v448, %v444
        %v565 = vpack.c.b16 %v449, %v445
        %v566 = vpack.c.b16 %v454, %v450
        %v567 = vpack.c.b16 %v455, %v451
        %v568 = vpack.c.b16 %v456, %v452
        %v569 = vpack.c.b16 %v457, %v453
        %v570 = vpack.c.b16 %v462, %v458
        %v571 = vpack.c.b16 %v463, %v459
        %v572 = vpack.c.b16 %v464, %v460
        %v573 = vpack.c.b16 %v465, %v461
        %v574 = vpack.c.b16 %v470, %v466
        %v575 = vpack.c.b16 %v471, %v467
        %v576 = vpack.c.b16 %v472, %v468
        %v577 = vpack.c.b16 %v473, %v469
        %v578 = vpack.c.b16 %v478, %v474
        %v579 = vpack.c.b16 %v479, %v475
        %v580 = vpack.c.b16 %v480, %v476
        %v581 = vpack.c.b16 %v481, %v477
        %v582 = vpack.c.b16 %v486, %v482
        %v583 = vpack.c.b16 %v487, %v483
        %v584 = vpack.c.b16 %v488, %v484
        %v585 = vpack.c.b16 %v489, %v485
        %v586 = vpack.c.b16 %v494, %v490
        %v587 = vpack.c.b16 %v495, %v491
        %v588 = vpack.c.b16 %v496, %v492
        %v589 = vpack.c.b16 %v497, %v493
        %v590 = vpack.c.b16 %v502, %v498
        %v591 = vpack.c.b16 %v503, %v499
        %v592 = vpack.c.b16 %v504, %v500
        %v593 = vpack.c.b16 %v505, %v501
        %v594 = vpack.c.b16 %v510, %v506
        %v595 = vpack.c.b16 %v511, %v507
        %v596 = vpack.c.b16 %v512, %v508
        %v597 = vpack.c.b16 %v513, %v509
        %v598 = vpack.c.b16 %v518, %v514
        %v599 = vpack.c.b16 %v519, %v515
        %v600 = vpack.c.b16 %v520, %v516
        %v601 = vpack.c.b16 %v521, %v517
        %v602 = vpack.c.b16 %v526, %v522
        %v603 = vpack.c.b16 %v527, %v523
        %v604 = vpack.c.b16 %v528, %v524
        %v605 = vpack.c.b16 %v529, %v525
        %v606 = vpack.c.b16 %v534, %v530
        %v607 = vpack.c.b16 %v535, %v531
        %v608 = vpack.c.b16 %v536, %v532
        %v609 = vpack.c.b16 %v537, %v533
        %v610 = vpack.c.b16 %v542, %v538
        %v611 = vpack.c.b16 %v543, %v539
        %v612 = vpack.c.b16 %v544, %v540
        %v613 = vpack.c.b16 %v545, %v541
        %v614 = vpack.c.b16 %v550, %v546
        %v615 = vpack.c.b16 %v551, %v547
        %v616 = vpack.c.b16 %v552, %v548
        %v617 = vpack.c.b16 %v553, %v549
        %682 = vmatprep.subr.bf16.mxu0 %v555
        %683 = vmatpush1.bf16.msra.mxu0 %v554
        %684 = vmatprep.subr.bf16.mxu0 %v559
        %685 = vmatpush1.bf16.msra.mxu0 %v558
        %686 = vmatprep.subr.bf16.mxu0 %v563
        %687 = vmatpush1.bf16.msra.mxu0 %v562
        %688 = vmatprep.subr.bf16.mxu0 %v567
        %689 = vmatpush1.bf16.msra.mxu0 %v566
        %690 = vmatprep.subr.bf16.mxu0 %v571
        %691 = vmatpush1.bf16.msra.mxu0 %v570
        %692 = vmatprep.subr.bf16.mxu0 %v575
        %693 = vmatpush1.bf16.msra.mxu0 %v574
        %694 = vmatprep.subr.bf16.mxu0 %v579
        %695 = vmatpush1.bf16.msra.mxu0 %v578
        %696 = vmatprep.subr.bf16.mxu0 %v583
        %697 = vmatpush1.bf16.msra.mxu0 %v582
        %698 = vmatprep.subr.bf16.mxu0 %v587
        %699 = vmatpush1.bf16.msra.mxu0 %v586
        %700 = vmatprep.subr.bf16.mxu0 %v591
        %701 = vmatpush1.bf16.msra.mxu0 %v590
        %702 = vmatprep.subr.bf16.mxu0 %v595
        %703 = vmatpush1.bf16.msra.mxu0 %v594
        %704 = vmatprep.subr.bf16.mxu0 %v599
        %705 = vmatpush1.bf16.msra.mxu0 %v598
        %706 = vmatprep.subr.bf16.mxu0 %v603
        %707 = vmatpush1.bf16.msra.mxu0 %v602
        %708 = vmatprep.subr.bf16.mxu0 %v607
        %709 = vmatpush1.bf16.msra.mxu0 %v606
        %710 = vmatprep.subr.bf16.mxu0 %v611
        %711 = vmatpush1.bf16.msra.mxu0 %v610
        %712 = vmatprep.subr.bf16.mxu0 %v615
        %713 = vmatpush1.bf16.msra.mxu0 %v614
        %714 = vmatprep.mubr.bf16.mxu0 %v359
        %715 = vmatmul.mubr.bf16.gmra.mrb[0].mxu0 %v358
        %v716 = vpop.f32.mrb[0].mxu0
        %v717 = vadd.f32 %v335, %v716
        %v718 = vpop.f32.mrb[0].mxu0
        %v719 = vadd.f32 %v339, %v718
        %v720 = vpop.f32.mrb[0].mxu0
        %v721 = vadd.f32 %v335, %v720
        %v722 = vpop.f32.mrb[0].mxu0
        %v723 = vadd.f32 %v339, %v722
        %724 = vdwg.mxu0
        %725 = vmatprep.subr.bf16.mxu0 %v557
        %726 = vmatpush1.bf16.msra.mxu0 %v556
        %727 = vmatprep.subr.bf16.mxu0 %v561
        %728 = vmatpush1.bf16.msra.mxu0 %v560
        %729 = vmatprep.subr.bf16.mxu0 %v565
        %730 = vmatpush1.bf16.msra.mxu0 %v564
        %731 = vmatprep.subr.bf16.mxu0 %v569
        %732 = vmatpush1.bf16.msra.mxu0 %v568
        %733 = vmatprep.subr.bf16.mxu0 %v573
        %734 = vmatpush1.bf16.msra.mxu0 %v572
        %735 = vmatprep.subr.bf16.mxu0 %v577
        %736 = vmatpush1.bf16.msra.mxu0 %v576
        %737 = vmatprep.subr.bf16.mxu0 %v581
        %738 = vmatpush1.bf16.msra.mxu0 %v580
        %739 = vmatprep.subr.bf16.mxu0 %v585
        %740 = vmatpush1.bf16.msra.mxu0 %v584
        %741 = vmatprep.subr.bf16.mxu0 %v589
        %742 = vmatpush1.bf16.msra.mxu0 %v588
        %743 = vmatprep.subr.bf16.mxu0 %v593
        %744 = vmatpush1.bf16.msra.mxu0 %v592
        %745 = vmatprep.subr.bf16.mxu0 %v597
        %746 = vmatpush1.bf16.msra.mxu0 %v596
        %747 = vmatprep.subr.bf16.mxu0 %v601
        %748 = vmatpush1.bf16.msra.mxu0 %v600
        %749 = vmatprep.subr.bf16.mxu0 %v605
        %750 = vmatpush1.bf16.msra.mxu0 %v604
        %751 = vmatprep.subr.bf16.mxu0 %v609
        %752 = vmatpush1.bf16.msra.mxu0 %v608
        %753 = vmatprep.subr.bf16.mxu0 %v613
        %754 = vmatpush1.bf16.msra.mxu0 %v612
        %755 = vmatprep.subr.bf16.mxu0 %v617
        %756 = vmatpush1.bf16.msra.mxu0 %v616
        %757 = vmatprep.mubr.bf16.mxu0 %v359
        %758 = vmatmul.mubr.bf16.gmra.mrb[0].mxu0 %v358
        %v759 = vpop.f32.mrb[0].mxu0
        %v760 = vadd.f32 %v343, %v759
        %v761 = vpop.f32.mrb[0].mxu0
        %v762 = vadd.f32 %v347, %v761
        %v763 = vpop.f32.mrb[0].mxu0
        %v764 = vadd.f32 %v343, %v763
        %v765 = vpop.f32.mrb[0].mxu0
        %v766 = vadd.f32 %v347, %v765
        %767 = vdwg.mxu0
        %v768 = vtanh.pop %v717
        %v769 = vtanh.pop %v719
        %v770 = vtanh.pop %v760
        %v771 = vtanh.pop %v762
        %v772 = vtanh.pop %v721
        %v773 = vtanh.pop %v723
        %v774 = vtanh.pop %v764
        %v775 = vtanh.pop %v766
        %v776 = vpack.c.bf16 %v772, %v768
        %v777 = vpack.c.bf16 %v773, %v769
        %v778 = vpack.c.bf16 %v774, %v770
        %v779 = vpack.c.bf16 %v775, %v771
        %v780 = vld [vmem:[#allocation7] sm:$0xf]
        %v781 = vld [vmem:[#allocation7 + $0x4] sm:$0xf]
        %v782 = vld [vmem:[#allocation7 + $0x8] sm:$0xf]
        %v783 = vld [vmem:[#allocation7 + $0xc] sm:$0xf]
        %v784 = vld [vmem:[#allocation7 + $0x10] sm:$0xf]
        %v785 = vld [vmem:[#allocation7 + $0x14] sm:$0xf]
        %v786 = vld [vmem:[#allocation7 + $0x18] sm:$0xf]
        %v787 = vld [vmem:[#allocation7 + $0x1c] sm:$0xf]
        %v788 = vld [vmem:[#allocation7 + $0x20] sm:$0xf]
        %v789 = vld [vmem:[#allocation7 + $0x24] sm:$0xf]
        %v790 = vld [vmem:[#allocation7 + $0x28] sm:$0xf]
        %v791 = vld [vmem:[#allocation7 + $0x2c] sm:$0xf]
        %v792 = vld [vmem:[#allocation7 + $0x30] sm:$0xf]
        %v793 = vld [vmem:[#allocation7 + $0x34] sm:$0xf]
        %v794 = vld [vmem:[#allocation7 + $0x38] sm:$0xf]
        %v795 = vld [vmem:[#allocation7 + $0x3c] sm:$0xf]
        %v796 = vld [vmem:[#allocation7 + $0x40] sm:$0xf]
        %v797 = vld [vmem:[#allocation7 + $0x44] sm:$0xf]
        %v798 = vld [vmem:[#allocation7 + $0x48] sm:$0xf]
        %v799 = vld [vmem:[#allocation7 + $0x4c] sm:$0xf]
        %v800 = vld [vmem:[#allocation7 + $0x50] sm:$0xf]
        %v801 = vld [vmem:[#allocation7 + $0x54] sm:$0xf]
        %v802 = vld [vmem:[#allocation7 + $0x58] sm:$0xf]
        %v803 = vld [vmem:[#allocation7 + $0x5c] sm:$0xf]
        %v804 = vld [vmem:[#allocation7 + $0x60] sm:$0xf]
        %v805 = vld [vmem:[#allocation7 + $0x64] sm:$0xf]
        %v806 = vld [vmem:[#allocation7 + $0x68] sm:$0xf]
        %v807 = vld [vmem:[#allocation7 + $0x6c] sm:$0xf]
        %v808 = vld [vmem:[#allocation7 + $0x70] sm:$0xf]
        %v809 = vld [vmem:[#allocation7 + $0x74] sm:$0xf]
        %v810 = vld [vmem:[#allocation7 + $0x78] sm:$0xf]
        %v811 = vld [vmem:[#allocation7 + $0x7c] sm:$0xf]
        %v812 = vld [vmem:[#allocation7 + $0x80] sm:$0xf]
        %v813 = vld [vmem:[#allocation7 + $0x84] sm:$0xf]
        %v814 = vld [vmem:[#allocation7 + $0x88] sm:$0xf]
        %v815 = vld [vmem:[#allocation7 + $0x8c] sm:$0xf]
        %v816 = vld [vmem:[#allocation7 + $0x90] sm:$0xf]
        %v817 = vld [vmem:[#allocation7 + $0x94] sm:$0xf]
        %v818 = vld [vmem:[#allocation7 + $0x98] sm:$0xf]
        %v819 = vld [vmem:[#allocation7 + $0x9c] sm:$0xf]
        %v820 = vld [vmem:[#allocation7 + $0xa0] sm:$0xf]
        %v821 = vld [vmem:[#allocation7 + $0xa4] sm:$0xf]
        %v822 = vld [vmem:[#allocation7 + $0xa8] sm:$0xf]
        %v823 = vld [vmem:[#allocation7 + $0xac] sm:$0xf]
        %v824 = vld [vmem:[#allocation7 + $0xb0] sm:$0xf]
        %v825 = vld [vmem:[#allocation7 + $0xb4] sm:$0xf]
        %v826 = vld [vmem:[#allocation7 + $0xb8] sm:$0xf]
        %v827 = vld [vmem:[#allocation7 + $0xbc] sm:$0xf]
        %v828 = vld [vmem:[#allocation7 + $0xc0] sm:$0xf]
        %v829 = vld [vmem:[#allocation7 + $0xc4] sm:$0xf]
        %v830 = vld [vmem:[#allocation7 + $0xc8] sm:$0xf]
        %v831 = vld [vmem:[#allocation7 + $0xcc] sm:$0xf]
        %v832 = vld [vmem:[#allocation7 + $0xd0] sm:$0xf]
        %v833 = vld [vmem:[#allocation7 + $0xd4] sm:$0xf]
        %v834 = vld [vmem:[#allocation7 + $0xd8] sm:$0xf]
        %v835 = vld [vmem:[#allocation7 + $0xdc] sm:$0xf]
        %v836 = vld [vmem:[#allocation7 + $0xe0] sm:$0xf]
        %v837 = vld [vmem:[#allocation7 + $0xe4] sm:$0xf]
        %v838 = vld [vmem:[#allocation7 + $0xe8] sm:$0xf]
        %v839 = vld [vmem:[#allocation7 + $0xec] sm:$0xf]
        %v840 = vld [vmem:[#allocation7 + $0xf0] sm:$0xf]
        %v841 = vld [vmem:[#allocation7 + $0xf4] sm:$0xf]
        %v842 = vld [vmem:[#allocation7 + $0xf8] sm:$0xf]
        %v843 = vld [vmem:[#allocation7 + $0xfc] sm:$0xf]
        %v908 = vunpack.c.l.b16 %v780
        %v909 = vunpack.c.l.b16 %v781
        %v910 = vunpack.c.l.b16 %v782
        %v911 = vunpack.c.l.b16 %v783
        %v912 = vunpack.c.l.b16 %v784
        %v913 = vunpack.c.l.b16 %v785
        %v914 = vunpack.c.l.b16 %v786
        %v915 = vunpack.c.l.b16 %v787
        %v916 = vunpack.c.l.b16 %v788
        %v917 = vunpack.c.l.b16 %v789
        %v918 = vunpack.c.l.b16 %v790
        %v919 = vunpack.c.l.b16 %v791
        %v920 = vunpack.c.l.b16 %v792
        %v921 = vunpack.c.l.b16 %v793
        %v922 = vunpack.c.l.b16 %v794
        %v923 = vunpack.c.l.b16 %v795
        %v924 = vunpack.c.l.b16 %v796
        %v925 = vunpack.c.l.b16 %v797
        %v926 = vunpack.c.l.b16 %v798
        %v927 = vunpack.c.l.b16 %v799
        %v928 = vunpack.c.l.b16 %v800
        %v929 = vunpack.c.l.b16 %v801
        %v930 = vunpack.c.l.b16 %v802
        %v931 = vunpack.c.l.b16 %v803
        %v932 = vunpack.c.l.b16 %v804
        %v933 = vunpack.c.l.b16 %v805
        %v934 = vunpack.c.l.b16 %v806
        %v935 = vunpack.c.l.b16 %v807
        %v936 = vunpack.c.l.b16 %v808
        %v937 = vunpack.c.l.b16 %v809
        %v938 = vunpack.c.l.b16 %v810
        %v939 = vunpack.c.l.b16 %v811
        %v940 = vunpack.c.l.b16 %v812
        %v941 = vunpack.c.l.b16 %v813
        %v942 = vunpack.c.l.b16 %v814
        %v943 = vunpack.c.l.b16 %v815
        %v944 = vunpack.c.l.b16 %v816
        %v945 = vunpack.c.l.b16 %v817
        %v946 = vunpack.c.l.b16 %v818
        %v947 = vunpack.c.l.b16 %v819
        %v948 = vunpack.c.l.b16 %v820
        %v949 = vunpack.c.l.b16 %v821
        %v950 = vunpack.c.l.b16 %v822
        %v951 = vunpack.c.l.b16 %v823
        %v952 = vunpack.c.l.b16 %v824
        %v953 = vunpack.c.l.b16 %v825
        %v954 = vunpack.c.l.b16 %v826
        %v955 = vunpack.c.l.b16 %v827
        %v956 = vunpack.c.l.b16 %v828
        %v957 = vunpack.c.l.b16 %v829
        %v958 = vunpack.c.l.b16 %v830
        %v959 = vunpack.c.l.b16 %v831
        %v960 = vunpack.c.l.b16 %v832
        %v961 = vunpack.c.l.b16 %v833
        %v962 = vunpack.c.l.b16 %v834
        %v963 = vunpack.c.l.b16 %v835
        %v964 = vunpack.c.l.b16 %v836
        %v965 = vunpack.c.l.b16 %v837
        %v966 = vunpack.c.l.b16 %v838
        %v967 = vunpack.c.l.b16 %v839
        %v968 = vunpack.c.l.b16 %v840
        %v969 = vunpack.c.l.b16 %v841
        %v970 = vunpack.c.l.b16 %v842
        %v971 = vunpack.c.l.b16 %v843
        %v972 = vpack.c.b16 %v909, %v908
        %v973 = vpack.c.b16 %v911, %v910
        %v974 = vpack.c.b16 %v913, %v912
        %v975 = vpack.c.b16 %v915, %v914
        %v976 = vpack.c.b16 %v917, %v916
        %v977 = vpack.c.b16 %v919, %v918
        %v978 = vpack.c.b16 %v921, %v920
        %v979 = vpack.c.b16 %v923, %v922
        %v980 = vpack.c.b16 %v925, %v924
        %v981 = vpack.c.b16 %v927, %v926
        %v982 = vpack.c.b16 %v929, %v928
        %v983 = vpack.c.b16 %v931, %v930
        %v984 = vpack.c.b16 %v933, %v932
        %v985 = vpack.c.b16 %v935, %v934
        %v986 = vpack.c.b16 %v937, %v936
        %v987 = vpack.c.b16 %v939, %v938
        %v988 = vpack.c.b16 %v941, %v940
        %v989 = vpack.c.b16 %v943, %v942
        %v990 = vpack.c.b16 %v945, %v944
        %v991 = vpack.c.b16 %v947, %v946
        %v992 = vpack.c.b16 %v949, %v948
        %v993 = vpack.c.b16 %v951, %v950
        %v994 = vpack.c.b16 %v953, %v952
        %v995 = vpack.c.b16 %v955, %v954
        %v996 = vpack.c.b16 %v957, %v956
        %v997 = vpack.c.b16 %v959, %v958
        %v998 = vpack.c.b16 %v961, %v960
        %v999 = vpack.c.b16 %v963, %v962
        %v1000 = vpack.c.b16 %v965, %v964
        %v1001 = vpack.c.b16 %v967, %v966
        %v1002 = vpack.c.b16 %v969, %v968
        %v1003 = vpack.c.b16 %v971, %v970
        %1036 = vmatprep.subr.bf16.mxu0 0
        %1037 = vmatpush1.bf16.msra.mxu0 %v972
        %1038 = vmatprep.subr.bf16.mxu0 0
        %1039 = vmatpush1.bf16.msra.mxu0 %v973
        %1040 = vmatprep.subr.bf16.mxu0 0
        %1041 = vmatpush1.bf16.msra.mxu0 %v974
        %1042 = vmatprep.subr.bf16.mxu0 0
        %1043 = vmatpush1.bf16.msra.mxu0 %v975
        %1044 = vmatprep.subr.bf16.mxu0 0
        %1045 = vmatpush1.bf16.msra.mxu0 %v976
        %1046 = vmatprep.subr.bf16.mxu0 0
        %1047 = vmatpush1.bf16.msra.mxu0 %v977
        %1048 = vmatprep.subr.bf16.mxu0 0
        %1049 = vmatpush1.bf16.msra.mxu0 %v978
        %1050 = vmatprep.subr.bf16.mxu0 0
        %1051 = vmatpush1.bf16.msra.mxu0 %v979
        %1052 = vmatprep.subr.bf16.mxu0 0
        %1053 = vmatpush1.bf16.msra.mxu0 %v980
        %1054 = vmatprep.subr.bf16.mxu0 0
        %1055 = vmatpush1.bf16.msra.mxu0 %v981
        %1056 = vmatprep.subr.bf16.mxu0 0
        %1057 = vmatpush1.bf16.msra.mxu0 %v982
        %1058 = vmatprep.subr.bf16.mxu0 0
        %1059 = vmatpush1.bf16.msra.mxu0 %v983
        %1060 = vmatprep.subr.bf16.mxu0 0
        %1061 = vmatpush1.bf16.msra.mxu0 %v984
        %1062 = vmatprep.subr.bf16.mxu0 0
        %1063 = vmatpush1.bf16.msra.mxu0 %v985
        %1064 = vmatprep.subr.bf16.mxu0 0
        %1065 = vmatpush1.bf16.msra.mxu0 %v986
        %1066 = vmatprep.subr.bf16.mxu0 0
        %1067 = vmatpush1.bf16.msra.mxu0 %v987
        %1068 = vmatprep.mubr.bf16.mxu0 %v777
        %1069 = vmatmul.mubr.bf16.gmra.mrb[0].mxu0 %v776
        %v1070 = vpop.f32.mrb[0].mxu0
        %v1071 = vadd.f32 %v265, %v1070
        %v1072 = vpop.f32.mrb[0].mxu0
        %v1073 = vpop.f32.mrb[0].mxu0
        %v1074 = vadd.f32 %v265, %v1073
        %v1075 = vpop.f32.mrb[0].mxu0
        %1076 = vdwg.mxu0
        %1077 = vmatprep.subr.bf16.mxu0 0
        %1078 = vmatpush1.bf16.msra.mxu0 %v988
        %1079 = vmatprep.subr.bf16.mxu0 0
        %1080 = vmatpush1.bf16.msra.mxu0 %v989
        %1081 = vmatprep.subr.bf16.mxu0 0
        %1082 = vmatpush1.bf16.msra.mxu0 %v990
        %1083 = vmatprep.subr.bf16.mxu0 0
        %1084 = vmatpush1.bf16.msra.mxu0 %v991
        %1085 = vmatprep.subr.bf16.mxu0 0
        %1086 = vmatpush1.bf16.msra.mxu0 %v992
        %1087 = vmatprep.subr.bf16.mxu0 0
        %1088 = vmatpush1.bf16.msra.mxu0 %v993
        %1089 = vmatprep.subr.bf16.mxu0 0
        %1090 = vmatpush1.bf16.msra.mxu0 %v994
        %1091 = vmatprep.subr.bf16.mxu0 0
        %1092 = vmatpush1.bf16.msra.mxu0 %v995
        %1093 = vmatprep.subr.bf16.mxu0 0
        %1094 = vmatpush1.bf16.msra.mxu0 %v996
        %1095 = vmatprep.subr.bf16.mxu0 0
        %1096 = vmatpush1.bf16.msra.mxu0 %v997
        %1097 = vmatprep.subr.bf16.mxu0 0
        %1098 = vmatpush1.bf16.msra.mxu0 %v998
        %1099 = vmatprep.subr.bf16.mxu0 0
        %1100 = vmatpush1.bf16.msra.mxu0 %v999
        %1101 = vmatprep.subr.bf16.mxu0 0
        %1102 = vmatpush1.bf16.msra.mxu0 %v1000
        %1103 = vmatprep.subr.bf16.mxu0 0
        %1104 = vmatpush1.bf16.msra.mxu0 %v1001
        %1105 = vmatprep.subr.bf16.mxu0 0
        %1106 = vmatpush1.bf16.msra.mxu0 %v1002
        %1107 = vmatprep.subr.bf16.mxu0 0
        %1108 = vmatpush1.bf16.msra.mxu0 %v1003
        %1109 = vmatprep.mubr.bf16.mxu0 %v779
        %1110 = vmatmul.mubr.bf16.gmra.mrb[0].mxu0 %v778
        %v1111 = vpop.f32.mrb[0].mxu0
        %v1112 = vadd.f32 %v1071, %v1111
        %v1113 = vpop.f32.mrb[0].mxu0
        %v1114 = vpop.f32.mrb[0].mxu0
        %v1115 = vadd.f32 %v1074, %v1114
        %v1116 = vpop.f32.mrb[0].mxu0
        %1117 = vdwg.mxu0
        %v1118 = vtanh.pop %v1112
        %v1119 = vtanh.pop %v1115
        %v1120 = vpack.c.bf16 %v1119, %v1118
        %v1121 = vld [vmem:[#allocation7 + $0x100] sm:$0xf]
        %v1122 = vld [vmem:[#allocation7 + $0x104] sm:$0xf]
        %v1123 = vld [vmem:[#allocation7 + $0x108] sm:$0xf]
        %v1124 = vld [vmem:[#allocation7 + $0x10c] sm:$0xf]
        %v1125 = vld [vmem:[#allocation7 + $0x110] sm:$0xf]
        %v1126 = vld [vmem:[#allocation7 + $0x114] sm:$0xf]
        %v1127 = vld [vmem:[#allocation7 + $0x118] sm:$0xf]
        %v1128 = vld [vmem:[#allocation7 + $0x11c] sm:$0xf]
        %v1129 = vld [vmem:[#allocation7 + $0x120] sm:$0xf]
        %v1130 = vld [vmem:[#allocation7 + $0x124] sm:$0xf]
        %v1131 = vld [vmem:[#allocation7 + $0x128] sm:$0xf]
        %v1132 = vld [vmem:[#allocation7 + $0x12c] sm:$0xf]
        %v1133 = vld [vmem:[#allocation7 + $0x130] sm:$0xf]
        %v1134 = vld [vmem:[#allocation7 + $0x134] sm:$0xf]
        %v1135 = vld [vmem:[#allocation7 + $0x138] sm:$0xf]
        %v1136 = vld [vmem:[#allocation7 + $0x13c] sm:$0xf]
        %v1153 = vunpack.c.l.b16 %v1121
        %v1154 = vunpack.c.l.b16 %v1122
        %v1155 = vunpack.c.l.b16 %v1123
        %v1156 = vunpack.c.l.b16 %v1124
        %v1157 = vunpack.c.l.b16 %v1125
        %v1158 = vunpack.c.l.b16 %v1126
        %v1159 = vunpack.c.l.b16 %v1127
        %v1160 = vunpack.c.l.b16 %v1128
        %v1161 = vunpack.c.l.b16 %v1129
        %v1162 = vunpack.c.l.b16 %v1130
        %v1163 = vunpack.c.l.b16 %v1131
        %v1164 = vunpack.c.l.b16 %v1132
        %v1165 = vunpack.c.l.b16 %v1133
        %v1166 = vunpack.c.l.b16 %v1134
        %v1167 = vunpack.c.l.b16 %v1135
        %v1168 = vunpack.c.l.b16 %v1136
        %v1169 = vpack.c.b16 %v1154, %v1153
        %v1170 = vpack.c.b16 %v1156, %v1155
        %v1171 = vpack.c.b16 %v1158, %v1157
        %v1172 = vpack.c.b16 %v1160, %v1159
        %v1173 = vpack.c.b16 %v1162, %v1161
        %v1174 = vpack.c.b16 %v1164, %v1163
        %v1175 = vpack.c.b16 %v1166, %v1165
        %v1176 = vpack.c.b16 %v1168, %v1167
        %1185 = vmatprep.subr.bf16.mxu0 0
        %1186 = vmatpush1.bf16.msra.mxu0 %v1169
        %1187 = vmatprep.subr.bf16.mxu0 0
        %1188 = vmatpush1.bf16.msra.mxu0 %v1170
        %1189 = vmatprep.subr.bf16.mxu0 0
        %1190 = vmatpush1.bf16.msra.mxu0 %v1171
        %1191 = vmatprep.subr.bf16.mxu0 0
        %1192 = vmatpush1.bf16.msra.mxu0 %v1172
        %1193 = vmatprep.subr.bf16.mxu0 0
        %1194 = vmatpush1.bf16.msra.mxu0 %v1173
        %1195 = vmatprep.subr.bf16.mxu0 0
        %1196 = vmatpush1.bf16.msra.mxu0 %v1174
        %1197 = vmatprep.subr.bf16.mxu0 0
        %1198 = vmatpush1.bf16.msra.mxu0 %v1175
        %1199 = vmatprep.subr.bf16.mxu0 0
        %1200 = vmatpush1.bf16.msra.mxu0 %v1176
        %1201 = vmatprep.subr.bf16.mxu0 0
        %1202 = vmatpush1.bf16.msra.mxu0 0
        %1203 = vmatprep.subr.bf16.mxu0 0
        %1204 = vmatpush1.bf16.msra.mxu0 0
        %1205 = vmatprep.subr.bf16.mxu0 0
        %1206 = vmatpush1.bf16.msra.mxu0 0
        %1207 = vmatprep.subr.bf16.mxu0 0
        %1208 = vmatpush1.bf16.msra.mxu0 0
        %1209 = vmatprep.subr.bf16.mxu0 0
        %1210 = vmatpush1.bf16.msra.mxu0 0
        %1211 = vmatprep.subr.bf16.mxu0 0
        %1212 = vmatpush1.bf16.msra.mxu0 0
        %1213 = vmatprep.subr.bf16.mxu0 0
        %1214 = vmatpush1.bf16.msra.mxu0 0
        %1215 = vmatprep.subr.bf16.mxu0 0
        %1216 = vmatpush1.bf16.msra.mxu0 0
        %1217 = vmatprep.mubr.bf16.mxu0 0
        %1218 = vmatmul.mubr.bf16.gmra.mrb[0].mxu0 %v1120
        %v1219 = vpop.f32.mrb[0].mxu0
        %v1220 = vadd.f32 %v266, %v1219
        %v1221 = vpop.f32.mrb[0].mxu0
        %v1222 = vpop.f32.mrb[0].mxu0
        %v1223 = vadd.f32 %v266, %v1222
        %v1224 = vpop.f32.mrb[0].mxu0
        %1225 = vdwg.mxu0
        %1226 = vst [vmem:[%s258] sm:$0xff] %v1220
        %1227 = vst [vmem:[%s258 + $0x8] sm:$0xff] %v1223
        %s1228 = sand.u32 %s120, 1
        %s1229 = scalar_lea.sflag [#allocation4], %s1228
        %s1230 = sand.u32 %s120, 1
        %s1231 = smul.addr %s1230, 16
        %s1232 = scalar_lea.vmem [#allocation10], %s1231
        // Predicated region
        $region53: #{tpu_custom_call.1} parent=35 // pred_check
          %p1233 = pneg %p130
        $region54: #{tpu_custom_call.1} parent=35 // pred_check_branch
          %1235 = sbr.rel (%p1233) target = $region56
        $region55: #{tpu_custom_call.1} parent=35 // pred_region
          %s1236 = smul.u32 2, %s23
          %s1238 = ssub.s32 256, 256
          %1239 = vsyncadd %s1229, %s1238
          %s1240 = smul.addr %s1236, 128
          %s1241 = scalar_lea.hbm %s4, %s1240
          %s1242 = sshll.u32 %s1232, 4
          %s1243 = int_to_ptr.vmem [resolvable:$true] %s1242
          %1248 = dma.vmem_to_hbm [thread:$0]  %s1243, 256, %s1241, %s1229, 128, 128, 8
        $region56: #{tpu_custom_call.1} parent=35 // pred_fallthru
          _
      $region36: #{tpu_custom_call.1} parent=5 // pred_fallthru
        _
      %p1249 = scmp.le.s32.totalorder 2, %s18
      // Predicated region
      $region57: #{tpu_custom_call.1} parent=5 // pred_check
        %p1250 = pneg %p1249
      $region58: #{tpu_custom_call.1} parent=5 // pred_check_branch
        %1252 = sbr.rel (%p1250) target = $region60
      $region59: #{tpu_custom_call.1} parent=5 // pred_region
        %s1253 = ssub.s32 %s18, 2
        // Predicated region
        $region61: #{tpu_custom_call.1} parent=59 // pred_check
          %p1254 = pneg %p136
        $region62: #{tpu_custom_call.1} parent=59 // pred_check_branch
          %1256 = sbr.rel (%p1254) target = $region64
        $region63: #{tpu_custom_call.1} parent=59 // pred_region
          %s1257 = sand.u32 %s121, 1
          %s1258 = scalar_lea.sflag [#allocation4], %s1257
          %s1259 = sand.u32 %s121, 1
          %s1260 = smul.addr %s1259, 16
          %s1261 = scalar_lea.vmem [#allocation10], %s1260
          %1262 = dma.done %s1258, 256
        $region64: #{tpu_custom_call.1} parent=59 // pred_fallthru
          _
      $region60: #{tpu_custom_call.1} parent=5 // pred_fallthru
        _
    $region6: #{tpu_custom_call.1} parent=1 // loop_footer
      %s22 = sadd.s32 1, %s18
    $region7: #{tpu_custom_call.1} parent=1 // loop_footer_branch
      %17 = sbr.rel target = $region3
    $region8: #{tpu_custom_call.1} parent=1 // loop_exit
      _
    %1263 = vsyncpa [#allocation3], 1
    %s1264 = scalar_lea.sflag [#allocation3], 1
    %1265 = vsyncpa %s1264, 1
    %1266 = vsyncpa [#allocation6], 1
    %1267 = vsyncpa [#allocation9], 1
    %1268 = vsyncpa [#allocation4], 1
    %s1269 = scalar_lea.sflag [#allocation4], 1
    %1270 = vsyncpa %s1269, 1

</llo_original>
